<compile_context>
chip_gen: v5e
topology: v5e:2x2
jax: 0.10.0
libtpu: 0.0.40
codegen_flags: <defaults>
</compile_context>

<pallas_src>
import math

import jax
import jax.numpy as jnp
from jax.experimental import pallas as pl
from jax.experimental.pallas import tpu as pltpu


# --------------------------------------------------------------------------
# Kernel
# --------------------------------------------------------------------------
def _cross_attn_kernel(q_ref, kv_ref, wq_ref, wk_ref, wv_ref, wp_ref,
                       bp_ref, es_ref, et_ref, out_ref):
    """One grid step == GB groups of P lane-packed batch elements.

    q_ref   : (1, GB, W)        pooled query, P batches packed along lanes
    kv_ref  : (1, GB, W, Nkv)   kv in native channel-major layout, packed
    wq_ref  : (W, W)            block-diagonal Wq^T
    wk_ref  : (W, W)            block-diagonal Wk^T
    wv_ref  : (W, W)            block-diagonal Wv^T
    wp_ref  : (W, W)            block-diagonal proj_w^T
    bp_ref  : (1, W)            proj bias, tiled P times
    es_ref  : (W, P*H)          block-diag head-expansion matrix * scale
    et_ref  : (P*H, W)          block-diag head-expansion matrix, transposed
    out_ref : (1, GB, W)        y = proj(attn @ v) + pooled query (lane-dense)
    """
    _, GB, W, Nkv = kv_ref.shape
    PH = es_ref.shape[1]

    qm = q_ref[0]                                                     # (GB, W)

    # Q projection (block-diagonal weight keeps lane-packed batches separate).
    q = jnp.dot(qm, wq_ref[...], preferred_element_type=jnp.float32)  # (GB, W)

    # kv arrives channel-major; the (W, Nkv) -> (Nkv, W) transpose runs on the
    # otherwise-idle XLU instead of an extra HBM pass in the wrapper.
    kv_tok = jnp.swapaxes(kv_ref[0], 1, 2)                            # (GB, Nkv, W)
    kv2 = kv_tok.reshape(GB * Nkv, W)

    # Separate K / V matmuls: same MXU pushes as a fused weight, but no
    # lane slice of the fused result.
    k = jnp.dot(kv2, wk_ref[...], preferred_element_type=jnp.float32)
    v = jnp.dot(kv2, wv_ref[...], preferred_element_type=jnp.float32)
    k = k.reshape(GB, Nkv, W)
    v = v.reshape(GB, Nkv, W)

    # Per-head scores via the block-diagonal head-expansion matrix
    # (softmax scale already folded into es_ref).
    kq = k * q[:, None, :]                                            # (GB, Nkv, W)
    scores = jnp.dot(kq.reshape(GB * Nkv, W), es_ref[...],
                     preferred_element_type=jnp.float32).reshape(GB, Nkv, PH)

    # Softmax over the kv-token axis (axis 1), per batch & head.
    m = jnp.max(scores, axis=1, keepdims=True)                        # (GB, 1, PH)
    e = jnp.exp(scores - m)                                           # (GB, Nkv, PH)
    denom = jnp.sum(e, axis=1, keepdims=True)                         # (GB, 1, PH)
    # Exact reciprocal keeps us safely inside the 1e-4 reference tolerance.
    attn = e * pl.reciprocal(denom)                                   # (GB, Nkv, PH)

    # Broadcast head attention back to channels and reduce over tokens.
    attn_c = jnp.dot(attn.reshape(GB * Nkv, PH), et_ref[...],
                     preferred_element_type=jnp.float32).reshape(GB, Nkv, W)
    ctx = jnp.sum(attn_c * v, axis=1)                                 # (GB, W)

    # Output projection + bias, residual with the pooled query; lane-dense store.
    x = jnp.dot(ctx, wp_ref[...], preferred_element_type=jnp.float32) + bp_ref[...]
    out_ref[0] = (x + qm).astype(out_ref.dtype)


# --------------------------------------------------------------------------
# Hardware-aware tiling helpers
# --------------------------------------------------------------------------
def _tpu_info():
    """(tensorcores_per_chip, per-core VMEM bytes) with conservative fallbacks."""
    vmem = 64 * 1024 * 1024          # conservative (v7x-sized) default
    ncores = 1
    try:
        info = pltpu.get_tpu_info()
        vmem = int(getattr(info, "vmem_capacity_bytes", vmem))
    except Exception:
        pass
    try:
        kind = jax.devices()[0].device_kind.lower()
        if "v7" in kind:
            ncores = 2               # v7x: 2 TensorCores share the parallel grid axis
    except Exception:
        pass
    return ncores, vmem


def _choose_grid(num_groups, n_kv, w, ph):
    """Pick (num_steps, groups_per_step).

    Single grid step on 1-TC chips (saves the ~0.35 us/step overhead), exactly
    `ncores` parallel steps on multi-TC chips (v7x), both bounded by VMEM.
    """
    ncores, vmem = _tpu_info()
    budget = int(vmem * 0.4)
    bytes_f32 = 4
    weight_bytes = bytes_f32 * (4 * w * w + 2 * w * ph + w)

    def est(gb):
        blocked = 2 * bytes_f32 * gb * w * (n_kv + 2)      # double-buffered q, kv, out
        inter = 6 * bytes_f32 * gb * n_kv * w              # rough live intermediates
        return weight_bytes + blocked + inter

    divs = [d for d in range(1, num_groups + 1) if num_groups % d == 0]
    fit = [d for d in divs if est(d) <= budget] or [1]
    if ncores >= 2:
        pref = ([d for d in fit if num_groups // d == ncores]
                or [d for d in fit if num_groups // d >= ncores]
                or fit)
    else:
        pref = fit
    gb = max(pref)
    return num_groups // gb, gb


def _vmem_limit_bytes():
    _, vmem = _tpu_info()
    return min(int(vmem * 3 // 4), 100 * 1024 * 1024)


# --------------------------------------------------------------------------
# One-time parameter preparation (hoisted out of the hot path)
# --------------------------------------------------------------------------
def prepare_params(params, num_heads, batch=None):
    """Transposes weights, folds the attention scale, and builds the
    block-diagonal lane-packed versions (P batches packed along 128 lanes)."""
    C = params["wq"].shape[0]
    assert C % num_heads == 0
    hd = C // num_heads
    scale = float(hd) ** -0.5

    # Lane-packing factor: P batch elements along the 128-lane axis.
    P = 128 // C if (C <= 128 and 128 % C == 0) else 1
    if batch is not None:
        P = math.gcd(P, int(batch)) or 1
    W = P * C

    def bd(w):
        """Block-diagonal expansion (r, c) -> (P*r, P*c)."""
        w = jnp.asarray(w, jnp.float32)
        if P == 1:
            return w
        eye = jnp.eye(P, dtype=jnp.float32)
        return jnp.einsum("ij,rc->irjc", eye, w).reshape(P * w.shape[0],
                                                         P * w.shape[1])

    wq_bd = bd(jnp.asarray(params["wq"], jnp.float32).T)               # (W, W)
    wk_bd = bd(jnp.asarray(params["wk"], jnp.float32).T)               # (W, W)
    wv_bd = bd(jnp.asarray(params["wv"], jnp.float32).T)               # (W, W)
    wp_bd = bd(jnp.asarray(params["proj_w"], jnp.float32).T)           # (W, W)
    bp = jnp.tile(jnp.asarray(params["proj_b"], jnp.float32), P).reshape(1, W)

    # Head-expansion matrix: E[c, h] = 1 iff c // head_dim == h.
    E = (jnp.arange(C)[:, None] // hd ==
         jnp.arange(num_heads)[None, :]).astype(jnp.float32)           # (C, H)
    es_bd = bd(E * scale)                                              # (W, P*H)
    et_bd = bd(E.T)                                                    # (P*H, W)

    return {"wq_bd": wq_bd, "wk_bd": wk_bd, "wv_bd": wv_bd, "wp_bd": wp_bd,
            "bp": bp, "es_bd": es_bd, "et_bd": et_bd}


# --------------------------------------------------------------------------
# Wrapper
# --------------------------------------------------------------------------
def cross_attention_csvit(query, kv, prep):
    """query: (B, C, N_query), kv: (B, C, N_kv)  ->  (B, C, N_query)."""
    B, C, Nq = query.shape
    Nkv = kv.shape[2]
    W = prep["wq_bd"].shape[0]
    PH = prep["es_bd"].shape[1]
    P = W // C
    assert W == P * C and B % P == 0, "batch not divisible by lane-pack factor"
    num_groups = B // P

    num_steps, GB = _choose_grid(num_groups, Nkv, W, PH)

    # Query max-pool and all layout work stay in XLA.  Both reshapes below are
    # contiguous (free): no extra HBM pass over kv (its native (B, C, Nkv)
    # layout is consumed directly).
    qmax = jnp.max(query, axis=2).astype(jnp.float32)                  # (B, C)
    q_in = qmax.reshape(num_steps, GB, W)
    kv_in = kv.astype(jnp.float32).reshape(num_steps, GB, W, Nkv)

    grid_spec = pltpu.PrefetchScalarGridSpec(
        num_scalar_prefetch=0,
        grid=(num_steps,),
        in_specs=[
            pl.BlockSpec((1, GB, W), lambda s: (s, 0, 0)),
            pl.BlockSpec((1, GB, W, Nkv), lambda s: (s, 0, 0, 0)),
            pl.BlockSpec((W, W), lambda s: (0, 0)),
            pl.BlockSpec((W, W), lambda s: (0, 0)),
            pl.BlockSpec((W, W), lambda s: (0, 0)),
            pl.BlockSpec((W, W), lambda s: (0, 0)),
            pl.BlockSpec((1, W), lambda s: (0, 0)),
            pl.BlockSpec((W, PH), lambda s: (0, 0)),
            pl.BlockSpec((PH, W), lambda s: (0, 0)),
        ],
        out_specs=pl.BlockSpec((1, GB, W), lambda s: (s, 0, 0)),
    )

    y = pl.pallas_call(
        _cross_attn_kernel,
        out_shape=jax.ShapeDtypeStruct((num_steps, GB, W), jnp.float32),
        grid_spec=grid_spec,
        compiler_params=pltpu.CompilerParams(
            dimension_semantics=("parallel",),
            vmem_limit_bytes=_vmem_limit_bytes()),
    )(q_in, kv_in, prep["wq_bd"], prep["wk_bd"], prep["wv_bd"],
      prep["wp_bd"], prep["bp"], prep["es_bd"], prep["et_bd"])

    # Un-pack (free contiguous reshape), then broadcast over N_query in XLA.
    y2 = y.reshape(B, C)
    return jnp.broadcast_to(y2[:, :, None], (B, C, Nq))


# --------------------------------------------------------------------------
# Plain-JAX reference (mirror of the PyTorch forward, eval mode)
# --------------------------------------------------------------------------
def _reference_forward(query, kv, params, num_heads):
    B, C, Nq = query.shape
    hd = C // num_heads
    scale = float(hd) ** -0.5
    qm = jnp.max(query, axis=2, keepdims=True)             # (B, C, 1)
    qp = jnp.transpose(qm, (0, 2, 1))                      # (B, 1, C)
    kvp = jnp.transpose(kv, (0, 2, 1))                     # (B, N, C)
    N = kvp.shape[1]
    q = qp @ params["wq"].T
    k = kvp @ params["wk"].T
    v = kvp @ params["wv"].T
    q = q.reshape(B, 1, num_heads, hd).transpose(0, 2, 1, 3)
    k = k.reshape(B, N, num_heads, hd).transpose(0, 2, 1, 3)
    v = v.reshape(B, N, num_heads, hd).transpose(0, 2, 1, 3)
    attn = (q @ jnp.swapaxes(k, -2, -1)) * scale
    attn = jax.nn.softmax(attn, axis=-1)
    x = (attn @ v).transpose(0, 2, 1, 3).reshape(B, 1, C)
    x = x @ params["proj_w"].T + params["proj_b"]
    x = jnp.repeat(x, Nq, axis=1)
    x = (x + qp).transpose(0, 2, 1)
    return x


if __name__ == "__main__":
    B, C, Nq, Nkv, H = 16, 32, 16, 8, 8

    key = jax.random.PRNGKey(0)
    kq, kk, kv_k, kp, kb, kx, ky = jax.random.split(key, 7)

    params = {
        "wq": jax.random.normal(kq, (C, C), jnp.float32) * 0.05,
        "wk": jax.random.normal(kk, (C, C), jnp.float32) * 0.05,
        "wv": jax.random.normal(kv_k, (C, C), jnp.float32) * 0.05,
        "proj_w": jax.random.normal(kp, (C, C), jnp.float32) * 0.05,
        "proj_b": jax.random.normal(kb, (C,), jnp.float32) * 0.05,
    }

    query = jax.random.normal(kx, (B, C, Nq), jnp.float32)
    kv = jax.random.normal(ky, (B, C, Nkv), jnp.float32)

    prep = prepare_params(params, num_heads=H, batch=B)   # one-time weight prep
    fwd = jax.jit(cross_attention_csvit)

    out = jax.block_until_ready(fwd(query, kv, prep))

    ref = _reference_forward(query, kv, params, num_heads=H)
    assert out.shape == (B, C, Nq)
    assert jnp.allclose(out, ref, atol=1e-4, rtol=1e-4)

    print("KERNEL_OK")
</pallas_src>

<mosaic_0001>
module attributes {stable_mosaic.version = 11 : i64} {
  func.func @_cross_attn_kernel(%arg0: i32, %arg1: memref<1x4x128xf32, #tpu.memory_space<vmem>>, %arg2: memref<1x4x128x8xf32, #tpu.memory_space<vmem>>, %arg3: memref<128x128xf32, #tpu.memory_space<vmem>>, %arg4: memref<128x128xf32, #tpu.memory_space<vmem>>, %arg5: memref<128x128xf32, #tpu.memory_space<vmem>>, %arg6: memref<128x128xf32, #tpu.memory_space<vmem>>, %arg7: memref<1x128xf32, #tpu.memory_space<vmem>>, %arg8: memref<128x32xf32, #tpu.memory_space<vmem>>, %arg9: memref<32x128xf32, #tpu.memory_space<vmem>>, %arg10: memref<1x4x128xf32, #tpu.memory_space<vmem>>) attributes {dimension_semantics = [#tpu.dimension_semantics<parallel>], iteration_bounds = array<i64: 1>, scalar_prefetch = 0 : i64, scratch_operands = 0 : i64, tpu.core_type = #tpu.core_type<tc>, window_params = [{transform_indices = @transform_0, window_bounds = array<i64: 1, 4, 128>}, {transform_indices = @transform_1, window_bounds = array<i64: 1, 4, 128, 8>}, {pipeline_mode = #tpu.pipeline_mode<synchronous>, transform_indices = @transform_2, window_bounds = array<i64: 128, 128>}, {pipeline_mode = #tpu.pipeline_mode<synchronous>, transform_indices = @transform_3, window_bounds = array<i64: 128, 128>}, {pipeline_mode = #tpu.pipeline_mode<synchronous>, transform_indices = @transform_4, window_bounds = array<i64: 128, 128>}, {pipeline_mode = #tpu.pipeline_mode<synchronous>, transform_indices = @transform_5, window_bounds = array<i64: 128, 128>}, {pipeline_mode = #tpu.pipeline_mode<synchronous>, transform_indices = @transform_6, window_bounds = array<i64: 1, 128>}, {pipeline_mode = #tpu.pipeline_mode<synchronous>, transform_indices = @transform_7, window_bounds = array<i64: 128, 32>}, {pipeline_mode = #tpu.pipeline_mode<synchronous>, transform_indices = @transform_8, window_bounds = array<i64: 32, 128>}, {transform_indices = @transform_9, window_bounds = array<i64: 1, 4, 128>}]} {
    %c0 = arith.constant 0 : index
    %c0_0 = arith.constant 0 : index
    %c0_1 = arith.constant 0 : index
    %0 = vector.load %arg1[%c0, %c0_0, %c0_1] : memref<1x4x128xf32, #tpu.memory_space<vmem>>, vector<1x4x128xf32>
    %1 = vector.shape_cast %0 : vector<1x4x128xf32> to vector<4x128xf32>
    %c0_2 = arith.constant 0 : index
    %c0_3 = arith.constant 0 : index
    %2 = vector.load %arg3[%c0_2, %c0_3] : memref<128x128xf32, #tpu.memory_space<vmem>>, vector<128x128xf32>
    %cst = arith.constant dense<0.000000e+00> : vector<4x128xf32>
    %3 = tpu.matmul %1, %2, %cst {dimension_numbers = #tpu.dot_dimension_numbers<[1], [0], [0], [1], [0, 0, 1, 1], [], []>} : vector<4x128xf32>, vector<128x128xf32>, vector<4x128xf32> -> vector<4x128xf32>
    %c0_4 = arith.constant 0 : index
    %c0_5 = arith.constant 0 : index
    %c0_6 = arith.constant 0 : index
    %c0_7 = arith.constant 0 : index
    %4 = vector.load %arg2[%c0_4, %c0_5, %c0_6, %c0_7] : memref<1x4x128x8xf32, #tpu.memory_space<vmem>>, vector<1x4x128x8xf32>
    %5 = vector.shape_cast %4 : vector<1x4x128x8xf32> to vector<4x128x8xf32>
    %6 = tpu.transpose %5, [0, 2, 1] : vector<4x128x8xf32> -> vector<4x8x128xf32>
    %7 = vector.shape_cast %6 : vector<4x8x128xf32> to vector<32x128xf32>
    %c0_8 = arith.constant 0 : index
    %c0_9 = arith.constant 0 : index
    %8 = vector.load %arg4[%c0_8, %c0_9] : memref<128x128xf32, #tpu.memory_space<vmem>>, vector<128x128xf32>
    %cst_10 = arith.constant dense<0.000000e+00> : vector<32x128xf32>
    %9 = tpu.matmul %7, %8, %cst_10 {dimension_numbers = #tpu.dot_dimension_numbers<[1], [0], [0], [1], [0, 0, 1, 1], [], []>} : vector<32x128xf32>, vector<128x128xf32>, vector<32x128xf32> -> vector<32x128xf32>
    %c0_11 = arith.constant 0 : index
    %c0_12 = arith.constant 0 : index
    %10 = vector.load %arg5[%c0_11, %c0_12] : memref<128x128xf32, #tpu.memory_space<vmem>>, vector<128x128xf32>
    %cst_13 = arith.constant dense<0.000000e+00> : vector<32x128xf32>
    %11 = tpu.matmul %7, %10, %cst_13 {dimension_numbers = #tpu.dot_dimension_numbers<[1], [0], [0], [1], [0, 0, 1, 1], [], []>} : vector<32x128xf32>, vector<128x128xf32>, vector<32x128xf32> -> vector<32x128xf32>
    %12 = vector.shape_cast %9 : vector<32x128xf32> to vector<4x8x128xf32>
    %13 = vector.shape_cast %11 : vector<32x128xf32> to vector<4x8x128xf32>
    %14 = vector.shape_cast %3 : vector<4x128xf32> to vector<4x1x128xf32>
    %15 = vector.broadcast %14 : vector<4x1x128xf32> to vector<4x8x128xf32>
    %16 = arith.mulf %12, %15 : vector<4x8x128xf32>
    %17 = vector.shape_cast %16 : vector<4x8x128xf32> to vector<32x128xf32>
    %c0_14 = arith.constant 0 : index
    %c0_15 = arith.constant 0 : index
    %18 = vector.load %arg8[%c0_14, %c0_15] : memref<128x32xf32, #tpu.memory_space<vmem>>, vector<128x32xf32>
    %cst_16 = arith.constant dense<0.000000e+00> : vector<32x32xf32>
    %19 = tpu.matmul %17, %18, %cst_16 {dimension_numbers = #tpu.dot_dimension_numbers<[1], [0], [0], [1], [0, 0, 1, 1], [], []>} : vector<32x128xf32>, vector<128x32xf32>, vector<32x32xf32> -> vector<32x32xf32>
    %20 = vector.shape_cast %19 : vector<32x32xf32> to vector<4x8x32xf32>
    %cst_17 = arith.constant dense<0xFF800000> : vector<4x32xf32>
    %21 = vector.multi_reduction <maximumf>, %20, %cst_17 [1] : vector<4x8x32xf32> to vector<4x32xf32>
    %22 = vector.shape_cast %21 : vector<4x32xf32> to vector<4x1x32xf32>
    %23 = vector.broadcast %22 : vector<4x1x32xf32> to vector<4x8x32xf32>
    %24 = arith.subf %20, %23 : vector<4x8x32xf32>
    %25 = math.exp %24 : vector<4x8x32xf32>
    %cst_18 = arith.constant dense<0.000000e+00> : vector<4x32xf32>
    %26 = vector.multi_reduction <add>, %25, %cst_18 [1] : vector<4x8x32xf32> to vector<4x32xf32>
    %27 = vector.shape_cast %26 : vector<4x32xf32> to vector<4x1x32xf32>
    %28 = tpu.reciprocal %27 : vector<4x1x32xf32> -> vector<4x1x32xf32>
    %29 = vector.broadcast %28 : vector<4x1x32xf32> to vector<4x8x32xf32>
    %30 = arith.mulf %25, %29 : vector<4x8x32xf32>
    %31 = vector.shape_cast %30 : vector<4x8x32xf32> to vector<32x32xf32>
    %c0_19 = arith.constant 0 : index
    %c0_20 = arith.constant 0 : index
    %32 = vector.load %arg9[%c0_19, %c0_20] : memref<32x128xf32, #tpu.memory_space<vmem>>, vector<32x128xf32>
    %cst_21 = arith.constant dense<0.000000e+00> : vector<32x128xf32>
    %33 = tpu.matmul %31, %32, %cst_21 {dimension_numbers = #tpu.dot_dimension_numbers<[1], [0], [0], [1], [0, 0, 1, 1], [], []>} : vector<32x32xf32>, vector<32x128xf32>, vector<32x128xf32> -> vector<32x128xf32>
    %34 = vector.shape_cast %33 : vector<32x128xf32> to vector<4x8x128xf32>
    %35 = arith.mulf %34, %13 : vector<4x8x128xf32>
    %cst_22 = arith.constant dense<0.000000e+00> : vector<4x128xf32>
    %36 = vector.multi_reduction <add>, %35, %cst_22 [1] : vector<4x8x128xf32> to vector<4x128xf32>
    %c0_23 = arith.constant 0 : index
    %c0_24 = arith.constant 0 : index
    %37 = vector.load %arg6[%c0_23, %c0_24] : memref<128x128xf32, #tpu.memory_space<vmem>>, vector<128x128xf32>
    %cst_25 = arith.constant dense<0.000000e+00> : vector<4x128xf32>
    %38 = tpu.matmul %36, %37, %cst_25 {dimension_numbers = #tpu.dot_dimension_numbers<[1], [0], [0], [1], [0, 0, 1, 1], [], []>} : vector<4x128xf32>, vector<128x128xf32>, vector<4x128xf32> -> vector<4x128xf32>
    %c0_26 = arith.constant 0 : index
    %c0_27 = arith.constant 0 : index
    %39 = vector.load %arg7[%c0_26, %c0_27] : memref<1x128xf32, #tpu.memory_space<vmem>>, vector<1x128xf32>
    %40 = vector.broadcast %39 : vector<1x128xf32> to vector<4x128xf32>
    %41 = arith.addf %38, %40 : vector<4x128xf32>
    %42 = arith.addf %41, %1 : vector<4x128xf32>
    %c0_28 = arith.constant 0 : index
    %c0_29 = arith.constant 0 : index
    %c0_30 = arith.constant 0 : index
    %43 = vector.load %arg10[%c0_28, %c0_29, %c0_30] : memref<1x4x128xf32, #tpu.memory_space<vmem>>, vector<1x4x128xf32>
    %44 = vector.shape_cast %43 : vector<1x4x128xf32> to vector<4x128xf32>
    %45 = vector.shape_cast %42 : vector<4x128xf32> to vector<1x4x128xf32>
    tpu.vector_store %arg10[%c0_28, %c0_29, %c0_30], %45 {strides = array<i32>} : memref<1x4x128xf32, #tpu.memory_space<vmem>>, vector<1x4x128xf32>,
    return
  }
  func.func @transform_0(%arg0: i32) -> (i32, i32, i32) {
    %c0_i32 = arith.constant 0 : i32
    %c0_i32_0 = arith.constant 0 : i32
    %c0_i32_1 = arith.constant 0 : i32
    return %arg0, %c0_i32, %c0_i32_0 : i32, i32, i32
  }
  func.func @transform_1(%arg0: i32) -> (i32, i32, i32, i32) {
    %c0_i32 = arith.constant 0 : i32
    %c0_i32_0 = arith.constant 0 : i32
    %c0_i32_1 = arith.constant 0 : i32
    %c0_i32_2 = arith.constant 0 : i32
    return %arg0, %c0_i32, %c0_i32_0, %c0_i32_1 : i32, i32, i32, i32
  }
  func.func @transform_2(%arg0: i32) -> (i32, i32) {
    %c0_i32 = arith.constant 0 : i32
    %c0_i32_0 = arith.constant 0 : i32
    %c0_i32_1 = arith.constant 0 : i32
    return %c0_i32, %c0_i32_0 : i32, i32
  }
  func.func @transform_3(%arg0: i32) -> (i32, i32) {
    %c0_i32 = arith.constant 0 : i32
    %c0_i32_0 = arith.constant 0 : i32
    %c0_i32_1 = arith.constant 0 : i32
    return %c0_i32, %c0_i32_0 : i32, i32
  }
  func.func @transform_4(%arg0: i32) -> (i32, i32) {
    %c0_i32 = arith.constant 0 : i32
    %c0_i32_0 = arith.constant 0 : i32
    %c0_i32_1 = arith.constant 0 : i32
    return %c0_i32, %c0_i32_0 : i32, i32
  }
  func.func @transform_5(%arg0: i32) -> (i32, i32) {
    %c0_i32 = arith.constant 0 : i32
    %c0_i32_0 = arith.constant 0 : i32
    %c0_i32_1 = arith.constant 0 : i32
    return %c0_i32, %c0_i32_0 : i32, i32
  }
  func.func @transform_6(%arg0: i32) -> (i32, i32) {
    %c0_i32 = arith.constant 0 : i32
    %c0_i32_0 = arith.constant 0 : i32
    %c0_i32_1 = arith.constant 0 : i32
    return %c0_i32, %c0_i32_0 : i32, i32
  }
  func.func @transform_7(%arg0: i32) -> (i32, i32) {
    %c0_i32 = arith.constant 0 : i32
    %c0_i32_0 = arith.constant 0 : i32
    %c0_i32_1 = arith.constant 0 : i32
    return %c0_i32, %c0_i32_0 : i32, i32
  }
  func.func @transform_8(%arg0: i32) -> (i32, i32) {
    %c0_i32 = arith.constant 0 : i32
    %c0_i32_0 = arith.constant 0 : i32
    %c0_i32_1 = arith.constant 0 : i32
    return %c0_i32, %c0_i32_0 : i32, i32
  }
  func.func @transform_9(%arg0: i32) -> (i32, i32, i32) {
    %c0_i32 = arith.constant 0 : i32
    %c0_i32_0 = arith.constant 0 : i32
    %c0_i32_1 = arith.constant 0 : i32
    return %arg0, %c0_i32, %c0_i32_0 : i32, i32, i32
  }
}

</mosaic_0001>

<llo_original>
// kernel: cross_attention_csvit.1
$region0: #{cross_attention_csvit.1}
  #allocation0 [shape = 'u32[]', space=smem, size = 0x4, offset = 0x4, fixed_abs, tag = 'smem constant byte address 0x4 - core index']
  #allocation1 [shape = 'u32[72,128]{1,0:T(1,128)}', space=vmem, size = 0x9000, scoped, tag = 'internal scratch']
  %s0 = inlined_call_operand.vmem [shape: f32[1,4,128], index: 0, kind: input, shape index: {}]
  %s1 = inlined_call_operand.vmem [shape: f32[1,4,128,8], index: 1, kind: input, shape index: {}]
  %s2 = inlined_call_operand.vmem [shape: f32[128,128], index: 2, kind: input, shape index: {}]
  %s3 = inlined_call_operand.vmem [shape: f32[128,128], index: 3, kind: input, shape index: {}]
  %s4 = inlined_call_operand.vmem [shape: f32[128,128], index: 4, kind: input, shape index: {}]
  %s5 = inlined_call_operand.vmem [shape: f32[128,128], index: 5, kind: input, shape index: {}]
  %s6 = inlined_call_operand.vmem [shape: f32[1,128], index: 6, kind: input, shape index: {}]
  %s7 = inlined_call_operand.vmem [shape: f32[128,32], index: 7, kind: input, shape index: {}]
  %s8 = inlined_call_operand.vmem [shape: f32[32,128], index: 8, kind: input, shape index: {}]
  %s9 = inlined_call_operand.vmem [shape: f32[1,4,128], index: 9, kind: output, shape index: {}]
  %s10 = sld [smem:[#allocation0]]
  $region46: #{cross_attention_csvit.1} parent=0
    _
  %s12 = ssub.s32 1, %s10
  %s13 = scalar_select 0, %s12, %s10
  // Predicated region
  $region2: #{cross_attention_csvit.1} parent=0 // pred_check
    _
  $region3: #{cross_attention_csvit.1} parent=0 // pred_check_branch
    %15 = sbr.rel (0) target = $region5
  $region4: #{cross_attention_csvit.1} parent=0 // pred_region
    _
  $region5: #{cross_attention_csvit.1} parent=0 // pred_fallthru
    _
  // Predicated region
  $region6: #{cross_attention_csvit.1} parent=0 // pred_check
    _
  $region7: #{cross_attention_csvit.1} parent=0 // pred_check_branch
    %17 = sbr.rel (0) target = $region9
  $region8: #{cross_attention_csvit.1} parent=0 // pred_region
    _
  $region9: #{cross_attention_csvit.1} parent=0 // pred_fallthru
    _
  // Predicated region
  $region10: #{cross_attention_csvit.1} parent=0 // pred_check
    _
  $region11: #{cross_attention_csvit.1} parent=0 // pred_check_branch
    %19 = sbr.rel (0) target = $region13
  $region12: #{cross_attention_csvit.1} parent=0 // pred_region
    _
  $region13: #{cross_attention_csvit.1} parent=0 // pred_fallthru
    _
  // Predicated region
  $region14: #{cross_attention_csvit.1} parent=0 // pred_check
    _
  $region15: #{cross_attention_csvit.1} parent=0 // pred_check_branch
    %21 = sbr.rel (0) target = $region17
  $region16: #{cross_attention_csvit.1} parent=0 // pred_region
    _
  $region17: #{cross_attention_csvit.1} parent=0 // pred_fallthru
    _
  // Predicated region
  $region18: #{cross_attention_csvit.1} parent=0 // pred_check
    _
  $region19: #{cross_attention_csvit.1} parent=0 // pred_check_branch
    %23 = sbr.rel (0) target = $region21
  $region20: #{cross_attention_csvit.1} parent=0 // pred_region
    _
  $region21: #{cross_attention_csvit.1} parent=0 // pred_fallthru
    _
  // Predicated region
  $region22: #{cross_attention_csvit.1} parent=0 // pred_check
    _
  $region23: #{cross_attention_csvit.1} parent=0 // pred_check_branch
    %25 = sbr.rel (0) target = $region25
  $region24: #{cross_attention_csvit.1} parent=0 // pred_region
    _
  $region25: #{cross_attention_csvit.1} parent=0 // pred_fallthru
    _
  // Predicated region
  $region26: #{cross_attention_csvit.1} parent=0 // pred_check
    _
  $region27: #{cross_attention_csvit.1} parent=0 // pred_check_branch
    %27 = sbr.rel (0) target = $region29
  $region28: #{cross_attention_csvit.1} parent=0 // pred_region
    _
  $region29: #{cross_attention_csvit.1} parent=0 // pred_fallthru
    _
  // Predicated region
  $region30: #{cross_attention_csvit.1} parent=0 // pred_check
    _
  $region31: #{cross_attention_csvit.1} parent=0 // pred_check_branch
    %29 = sbr.rel (0) target = $region33
  $region32: #{cross_attention_csvit.1} parent=0 // pred_region
    _
  $region33: #{cross_attention_csvit.1} parent=0 // pred_fallthru
    _
  // Predicated region
  $region34: #{cross_attention_csvit.1} parent=0 // pred_check
    _
  $region35: #{cross_attention_csvit.1} parent=0 // pred_check_branch
    %31 = sbr.rel (0) target = $region37
  $region36: #{cross_attention_csvit.1} parent=0 // pred_region
    _
  $region37: #{cross_attention_csvit.1} parent=0 // pred_fallthru
    _
  %v32 = vld [vmem:[%s0] sm:$0xf]
  %v33 = vld [vmem:[%s2] sm:$0xff]
  %v34 = vld [vmem:[%s2 + $0x8] sm:$0xff]
  %v35 = vld [vmem:[%s2 + $0x10] sm:$0xff]
  %v36 = vld [vmem:[%s2 + $0x18] sm:$0xff]
  %v37 = vld [vmem:[%s2 + $0x20] sm:$0xff]
  %v38 = vld [vmem:[%s2 + $0x28] sm:$0xff]
  %v39 = vld [vmem:[%s2 + $0x30] sm:$0xff]
  %v40 = vld [vmem:[%s2 + $0x38] sm:$0xff]
  %v41 = vld [vmem:[%s2 + $0x40] sm:$0xff]
  %v42 = vld [vmem:[%s2 + $0x48] sm:$0xff]
  %v43 = vld [vmem:[%s2 + $0x50] sm:$0xff]
  %v44 = vld [vmem:[%s2 + $0x58] sm:$0xff]
  %v45 = vld [vmem:[%s2 + $0x60] sm:$0xff]
  %v46 = vld [vmem:[%s2 + $0x68] sm:$0xff]
  %v47 = vld [vmem:[%s2 + $0x70] sm:$0xff]
  %v48 = vld [vmem:[%s2 + $0x78] sm:$0xff]
  %49 = vmatpush.msra.mxu0 %v48
  %50 = vmatpush.msra.mxu0 %v47
  %51 = vmatpush.msra.mxu0 %v46
  %52 = vmatpush.msra.mxu0 %v45
  %53 = vmatpush.msra.mxu0 %v44
  %54 = vmatpush.msra.mxu0 %v43
  %55 = vmatpush.msra.mxu0 %v42
  %56 = vmatpush.msra.mxu0 %v41
  %57 = vmatpush.msra.mxu0 %v40
  %58 = vmatpush.msra.mxu0 %v39
  %59 = vmatpush.msra.mxu0 %v38
  %60 = vmatpush.msra.mxu0 %v37
  %61 = vmatpush.msra.mxu0 %v36
  %62 = vmatpush.msra.mxu0 %v35
  %63 = vmatpush.msra.mxu0 %v34
  %64 = vmatpush.msra.mxu0 %v33
  %65 = vmatmul.f32.gmra.mxu0 %v32
  %v66 = vpop.f32.mrf.mxu0
  %v67 = vadd.f32 0.0, %v66
  %68 = vdwg.mxu0
  %v69 = vld [vmem:[%s1] sm:$0xff]
  %v70 = vld [vmem:[%s1 + $0x8] sm:$0xff]
  %v71 = vld [vmem:[%s1 + $0x10] sm:$0xff]
  %v72 = vld [vmem:[%s1 + $0x18] sm:$0xff]
  %v73 = vld [vmem:[%s1 + $0x20] sm:$0xff]
  %v74 = vld [vmem:[%s1 + $0x28] sm:$0xff]
  %v75 = vld [vmem:[%s1 + $0x30] sm:$0xff]
  %v76 = vld [vmem:[%s1 + $0x38] sm:$0xff]
  %v77 = vld [vmem:[%s1 + $0x40] sm:$0xff]
  %v78 = vld [vmem:[%s1 + $0x48] sm:$0xff]
  %v79 = vld [vmem:[%s1 + $0x50] sm:$0xff]
  %v80 = vld [vmem:[%s1 + $0x58] sm:$0xff]
  %v81 = vld [vmem:[%s1 + $0x60] sm:$0xff]
  %v82 = vld [vmem:[%s1 + $0x68] sm:$0xff]
  %v83 = vld [vmem:[%s1 + $0x70] sm:$0xff]
  %v84 = vld [vmem:[%s1 + $0x78] sm:$0xff]
  %v85 = vld [vmem:[%s1 + $0x80] sm:$0xff]
  %v86 = vld [vmem:[%s1 + $0x88] sm:$0xff]
  %v87 = vld [vmem:[%s1 + $0x90] sm:$0xff]
  %v88 = vld [vmem:[%s1 + $0x98] sm:$0xff]
  %v89 = vld [vmem:[%s1 + $0xa0] sm:$0xff]
  %v90 = vld [vmem:[%s1 + $0xa8] sm:$0xff]
  %v91 = vld [vmem:[%s1 + $0xb0] sm:$0xff]
  %v92 = vld [vmem:[%s1 + $0xb8] sm:$0xff]
  %v93 = vld [vmem:[%s1 + $0xc0] sm:$0xff]
  %v94 = vld [vmem:[%s1 + $0xc8] sm:$0xff]
  %v95 = vld [vmem:[%s1 + $0xd0] sm:$0xff]
  %v96 = vld [vmem:[%s1 + $0xd8] sm:$0xff]
  %v97 = vld [vmem:[%s1 + $0xe0] sm:$0xff]
  %v98 = vld [vmem:[%s1 + $0xe8] sm:$0xff]
  %v99 = vld [vmem:[%s1 + $0xf0] sm:$0xff]
  %v100 = vld [vmem:[%s1 + $0xf8] sm:$0xff]
  %v101 = vld [vmem:[%s1 + $0x100] sm:$0xff]
  %v102 = vld [vmem:[%s1 + $0x108] sm:$0xff]
  %v103 = vld [vmem:[%s1 + $0x110] sm:$0xff]
  %v104 = vld [vmem:[%s1 + $0x118] sm:$0xff]
  %v105 = vld [vmem:[%s1 + $0x120] sm:$0xff]
  %v106 = vld [vmem:[%s1 + $0x128] sm:$0xff]
  %v107 = vld [vmem:[%s1 + $0x130] sm:$0xff]
  %v108 = vld [vmem:[%s1 + $0x138] sm:$0xff]
  %v109 = vld [vmem:[%s1 + $0x140] sm:$0xff]
  %v110 = vld [vmem:[%s1 + $0x148] sm:$0xff]
  %v111 = vld [vmem:[%s1 + $0x150] sm:$0xff]
  %v112 = vld [vmem:[%s1 + $0x158] sm:$0xff]
  %v113 = vld [vmem:[%s1 + $0x160] sm:$0xff]
  %v114 = vld [vmem:[%s1 + $0x168] sm:$0xff]
  %v115 = vld [vmem:[%s1 + $0x170] sm:$0xff]
  %v116 = vld [vmem:[%s1 + $0x178] sm:$0xff]
  %v117 = vld [vmem:[%s1 + $0x180] sm:$0xff]
  %v118 = vld [vmem:[%s1 + $0x188] sm:$0xff]
  %v119 = vld [vmem:[%s1 + $0x190] sm:$0xff]
  %v120 = vld [vmem:[%s1 + $0x198] sm:$0xff]
  %v121 = vld [vmem:[%s1 + $0x1a0] sm:$0xff]
  %v122 = vld [vmem:[%s1 + $0x1a8] sm:$0xff]
  %v123 = vld [vmem:[%s1 + $0x1b0] sm:$0xff]
  %v124 = vld [vmem:[%s1 + $0x1b8] sm:$0xff]
  %v125 = vld [vmem:[%s1 + $0x1c0] sm:$0xff]
  %v126 = vld [vmem:[%s1 + $0x1c8] sm:$0xff]
  %v127 = vld [vmem:[%s1 + $0x1d0] sm:$0xff]
  %v128 = vld [vmem:[%s1 + $0x1d8] sm:$0xff]
  %v129 = vld [vmem:[%s1 + $0x1e0] sm:$0xff]
  %v130 = vld [vmem:[%s1 + $0x1e8] sm:$0xff]
  %v131 = vld [vmem:[%s1 + $0x1f0] sm:$0xff]
  %v132 = vld [vmem:[%s1 + $0x1f8] sm:$0xff]
  %133 = vxpose.xlu0.b32.start [1/16] %v69, 128
  %134 = vxpose.xlu0.b32.cont [2/16] %v70, 128
  %135 = vxpose.xlu0.b32.cont [3/16] %v71, 128
  %136 = vxpose.xlu0.b32.cont [4/16] %v72, 128
  %137 = vxpose.xlu0.b32.cont [5/16] %v73, 128
  %138 = vxpose.xlu0.b32.cont [6/16] %v74, 128
  %139 = vxpose.xlu0.b32.cont [7/16] %v75, 128
  %140 = vxpose.xlu0.b32.cont [8/16] %v76, 128
  %141 = vxpose.xlu0.b32.cont [9/16] %v77, 128
  %142 = vxpose.xlu0.b32.cont [10/16] %v78, 128
  %143 = vxpose.xlu0.b32.cont [11/16] %v79, 128
  %144 = vxpose.xlu0.b32.cont [12/16] %v80, 128
  %145 = vxpose.xlu0.b32.cont [13/16] %v81, 128
  %146 = vxpose.xlu0.b32.cont [14/16] %v82, 128
  %147 = vxpose.xlu0.b32.cont [15/16] %v83, 128
  %148 = vxpose.xlu0.b32.end [16/16] %v84, 128
  %v149 = vpop.trf.xlu0
  %v150 = vpop.trf.xlu0
  %v151 = vpop.trf.xlu0
  %v152 = vpop.trf.xlu0
  %v153 = vpop.trf.xlu0
  %v154 = vpop.trf.xlu0
  %v155 = vpop.trf.xlu0
  %v156 = vpop.trf.xlu0
  %v157 = vpop.trf.xlu0
  %v158 = vpop.trf.xlu0
  %v159 = vpop.trf.xlu0
  %v160 = vpop.trf.xlu0
  %v161 = vpop.trf.xlu0
  %v162 = vpop.trf.xlu0
  %v163 = vpop.trf.xlu0
  %v164 = vpop.trf.xlu0
  %165 = vxpose.xlu0.b32.start [1/16] %v85, 128
  %166 = vxpose.xlu0.b32.cont [2/16] %v86, 128
  %167 = vxpose.xlu0.b32.cont [3/16] %v87, 128
  %168 = vxpose.xlu0.b32.cont [4/16] %v88, 128
  %169 = vxpose.xlu0.b32.cont [5/16] %v89, 128
  %170 = vxpose.xlu0.b32.cont [6/16] %v90, 128
  %171 = vxpose.xlu0.b32.cont [7/16] %v91, 128
  %172 = vxpose.xlu0.b32.cont [8/16] %v92, 128
  %173 = vxpose.xlu0.b32.cont [9/16] %v93, 128
  %174 = vxpose.xlu0.b32.cont [10/16] %v94, 128
  %175 = vxpose.xlu0.b32.cont [11/16] %v95, 128
  %176 = vxpose.xlu0.b32.cont [12/16] %v96, 128
  %177 = vxpose.xlu0.b32.cont [13/16] %v97, 128
  %178 = vxpose.xlu0.b32.cont [14/16] %v98, 128
  %179 = vxpose.xlu0.b32.cont [15/16] %v99, 128
  %180 = vxpose.xlu0.b32.end [16/16] %v100, 128
  %v181 = vpop.trf.xlu0
  %v182 = vpop.trf.xlu0
  %v183 = vpop.trf.xlu0
  %v184 = vpop.trf.xlu0
  %v185 = vpop.trf.xlu0
  %v186 = vpop.trf.xlu0
  %v187 = vpop.trf.xlu0
  %v188 = vpop.trf.xlu0
  %v189 = vpop.trf.xlu0
  %v190 = vpop.trf.xlu0
  %v191 = vpop.trf.xlu0
  %v192 = vpop.trf.xlu0
  %v193 = vpop.trf.xlu0
  %v194 = vpop.trf.xlu0
  %v195 = vpop.trf.xlu0
  %v196 = vpop.trf.xlu0
  %197 = vxpose.xlu0.b32.start [1/16] %v101, 128
  %198 = vxpose.xlu0.b32.cont [2/16] %v102, 128
  %199 = vxpose.xlu0.b32.cont [3/16] %v103, 128
  %200 = vxpose.xlu0.b32.cont [4/16] %v104, 128
  %201 = vxpose.xlu0.b32.cont [5/16] %v105, 128
  %202 = vxpose.xlu0.b32.cont [6/16] %v106, 128
  %203 = vxpose.xlu0.b32.cont [7/16] %v107, 128
  %204 = vxpose.xlu0.b32.cont [8/16] %v108, 128
  %205 = vxpose.xlu0.b32.cont [9/16] %v109, 128
  %206 = vxpose.xlu0.b32.cont [10/16] %v110, 128
  %207 = vxpose.xlu0.b32.cont [11/16] %v111, 128
  %208 = vxpose.xlu0.b32.cont [12/16] %v112, 128
  %209 = vxpose.xlu0.b32.cont [13/16] %v113, 128
  %210 = vxpose.xlu0.b32.cont [14/16] %v114, 128
  %211 = vxpose.xlu0.b32.cont [15/16] %v115, 128
  %212 = vxpose.xlu0.b32.end [16/16] %v116, 128
  %v213 = vpop.trf.xlu0
  %v214 = vpop.trf.xlu0
  %v215 = vpop.trf.xlu0
  %v216 = vpop.trf.xlu0
  %v217 = vpop.trf.xlu0
  %v218 = vpop.trf.xlu0
  %v219 = vpop.trf.xlu0
  %v220 = vpop.trf.xlu0
  %v221 = vpop.trf.xlu0
  %v222 = vpop.trf.xlu0
  %v223 = vpop.trf.xlu0
  %v224 = vpop.trf.xlu0
  %v225 = vpop.trf.xlu0
  %v226 = vpop.trf.xlu0
  %v227 = vpop.trf.xlu0
  %v228 = vpop.trf.xlu0
  %229 = vxpose.xlu0.b32.start [1/16] %v117, 128
  %230 = vxpose.xlu0.b32.cont [2/16] %v118, 128
  %231 = vxpose.xlu0.b32.cont [3/16] %v119, 128
  %232 = vxpose.xlu0.b32.cont [4/16] %v120, 128
  %233 = vxpose.xlu0.b32.cont [5/16] %v121, 128
  %234 = vxpose.xlu0.b32.cont [6/16] %v122, 128
  %235 = vxpose.xlu0.b32.cont [7/16] %v123, 128
  %236 = vxpose.xlu0.b32.cont [8/16] %v124, 128
  %237 = vxpose.xlu0.b32.cont [9/16] %v125, 128
  %238 = vxpose.xlu0.b32.cont [10/16] %v126, 128
  %239 = vxpose.xlu0.b32.cont [11/16] %v127, 128
  %240 = vxpose.xlu0.b32.cont [12/16] %v128, 128
  %241 = vxpose.xlu0.b32.cont [13/16] %v129, 128
  %242 = vxpose.xlu0.b32.cont [14/16] %v130, 128
  %243 = vxpose.xlu0.b32.cont [15/16] %v131, 128
  %244 = vxpose.xlu0.b32.end [16/16] %v132, 128
  %v245 = vpop.trf.xlu0
  %v246 = vpop.trf.xlu0
  %v247 = vpop.trf.xlu0
  %v248 = vpop.trf.xlu0
  %v249 = vpop.trf.xlu0
  %v250 = vpop.trf.xlu0
  %v251 = vpop.trf.xlu0
  %v252 = vpop.trf.xlu0
  %v253 = vpop.trf.xlu0
  %v254 = vpop.trf.xlu0
  %v255 = vpop.trf.xlu0
  %v256 = vpop.trf.xlu0
  %v257 = vpop.trf.xlu0
  %v258 = vpop.trf.xlu0
  %v259 = vpop.trf.xlu0
  %v260 = vpop.trf.xlu0
  %v261 = vld [vmem:[%s3] sm:$0xff]
  %v262 = vld [vmem:[%s3 + $0x8] sm:$0xff]
  %v263 = vld [vmem:[%s3 + $0x10] sm:$0xff]
  %v264 = vld [vmem:[%s3 + $0x18] sm:$0xff]
  %v265 = vld [vmem:[%s3 + $0x20] sm:$0xff]
  %v266 = vld [vmem:[%s3 + $0x28] sm:$0xff]
  %v267 = vld [vmem:[%s3 + $0x30] sm:$0xff]
  %v268 = vld [vmem:[%s3 + $0x38] sm:$0xff]
  %v269 = vld [vmem:[%s3 + $0x40] sm:$0xff]
  %v270 = vld [vmem:[%s3 + $0x48] sm:$0xff]
  %v271 = vld [vmem:[%s3 + $0x50] sm:$0xff]
  %v272 = vld [vmem:[%s3 + $0x58] sm:$0xff]
  %v273 = vld [vmem:[%s3 + $0x60] sm:$0xff]
  %v274 = vld [vmem:[%s3 + $0x68] sm:$0xff]
  %v275 = vld [vmem:[%s3 + $0x70] sm:$0xff]
  %v276 = vld [vmem:[%s3 + $0x78] sm:$0xff]
  %277 = vmatpush.msra.mxu0 %v276
  %278 = vmatpush.msra.mxu0 %v275
  %279 = vmatpush.msra.mxu0 %v274
  %280 = vmatpush.msra.mxu0 %v273
  %281 = vmatpush.msra.mxu0 %v272
  %282 = vmatpush.msra.mxu0 %v271
  %283 = vmatpush.msra.mxu0 %v270
  %284 = vmatpush.msra.mxu0 %v269
  %285 = vmatpush.msra.mxu0 %v268
  %286 = vmatpush.msra.mxu0 %v267
  %287 = vmatpush.msra.mxu0 %v266
  %288 = vmatpush.msra.mxu0 %v265
  %289 = vmatpush.msra.mxu0 %v264
  %290 = vmatpush.msra.mxu0 %v263
  %291 = vmatpush.msra.mxu0 %v262
  %292 = vmatpush.msra.mxu0 %v261
  %293 = vmatmul.f32.gmra.mxu0 %v149
  %v294 = vpop.f32.mrf.mxu0
  %v295 = vadd.f32 0.0, %v294
  %296 = vmatmul.f32.gmra.mxu0 %v181
  %v297 = vpop.f32.mrf.mxu0
  %v298 = vadd.f32 0.0, %v297
  %299 = vmatmul.f32.gmra.mxu0 %v213
  %v300 = vpop.f32.mrf.mxu0
  %v301 = vadd.f32 0.0, %v300
  %302 = vmatmul.f32.gmra.mxu0 %v245
  %v303 = vpop.f32.mrf.mxu0
  %v304 = vadd.f32 0.0, %v303
  %305 = vdwg.mxu0
  %v306 = vld [vmem:[%s4] sm:$0xff]
  %v307 = vld [vmem:[%s4 + $0x8] sm:$0xff]
  %v308 = vld [vmem:[%s4 + $0x10] sm:$0xff]
  %v309 = vld [vmem:[%s4 + $0x18] sm:$0xff]
  %v310 = vld [vmem:[%s4 + $0x20] sm:$0xff]
  %v311 = vld [vmem:[%s4 + $0x28] sm:$0xff]
  %v312 = vld [vmem:[%s4 + $0x30] sm:$0xff]
  %v313 = vld [vmem:[%s4 + $0x38] sm:$0xff]
  %v314 = vld [vmem:[%s4 + $0x40] sm:$0xff]
  %v315 = vld [vmem:[%s4 + $0x48] sm:$0xff]
  %v316 = vld [vmem:[%s4 + $0x50] sm:$0xff]
  %v317 = vld [vmem:[%s4 + $0x58] sm:$0xff]
  %v318 = vld [vmem:[%s4 + $0x60] sm:$0xff]
  %v319 = vld [vmem:[%s4 + $0x68] sm:$0xff]
  %v320 = vld [vmem:[%s4 + $0x70] sm:$0xff]
  %v321 = vld [vmem:[%s4 + $0x78] sm:$0xff]
  %322 = vmatpush.msra.mxu0 %v321
  %323 = vmatpush.msra.mxu0 %v320
  %324 = vmatpush.msra.mxu0 %v319
  %325 = vmatpush.msra.mxu0 %v318
  %326 = vmatpush.msra.mxu0 %v317
  %327 = vmatpush.msra.mxu0 %v316
  %328 = vmatpush.msra.mxu0 %v315
  %329 = vmatpush.msra.mxu0 %v314
  %330 = vmatpush.msra.mxu0 %v313
  %331 = vmatpush.msra.mxu0 %v312
  %332 = vmatpush.msra.mxu0 %v311
  %333 = vmatpush.msra.mxu0 %v310
  %334 = vmatpush.msra.mxu0 %v309
  %335 = vmatpush.msra.mxu0 %v308
  %336 = vmatpush.msra.mxu0 %v307
  %337 = vmatpush.msra.mxu0 %v306
  %338 = vmatmul.f32.gmra.mxu0 %v149
  %v339 = vpop.f32.mrf.mxu0
  %v340 = vadd.f32 0.0, %v339
  %341 = vmatmul.f32.gmra.mxu0 %v181
  %v342 = vpop.f32.mrf.mxu0
  %v343 = vadd.f32 0.0, %v342
  %344 = vmatmul.f32.gmra.mxu0 %v213
  %v345 = vpop.f32.mrf.mxu0
  %v346 = vadd.f32 0.0, %v345
  %347 = vmatmul.f32.gmra.mxu0 %v245
  %v348 = vpop.f32.mrf.mxu0
  %v349 = vadd.f32 0.0, %v348
  %350 = vdwg.mxu0
  %v352 = vrot.slane %v67, 1
  %v353 = vrot.slane %v67, 2
  %v354 = vrot.slane %v67, 3
  %v355 = vperm.slane %v67, 0
  %v356 = vperm.slane %v352, 0
  %v357 = vperm.slane %v353, 0
  %v358 = vperm.slane %v354, 0
  %v363 = vmul.f32 %v295, %v355
  %v364 = vmul.f32 %v298, %v356
  %v365 = vmul.f32 %v301, %v357
  %v366 = vmul.f32 %v304, %v358
  %v367 = vld [vmem:[%s7] sm:$0xff]
  %v368 = vld [vmem:[%s7 + $0x8] sm:$0xff]
  %v369 = vld [vmem:[%s7 + $0x10] sm:$0xff]
  %v370 = vld [vmem:[%s7 + $0x18] sm:$0xff]
  %v371 = vld [vmem:[%s7 + $0x20] sm:$0xff]
  %v372 = vld [vmem:[%s7 + $0x28] sm:$0xff]
  %v373 = vld [vmem:[%s7 + $0x30] sm:$0xff]
  %v374 = vld [vmem:[%s7 + $0x38] sm:$0xff]
  %v375 = vld [vmem:[%s7 + $0x40] sm:$0xff]
  %v376 = vld [vmem:[%s7 + $0x48] sm:$0xff]
  %v377 = vld [vmem:[%s7 + $0x50] sm:$0xff]
  %v378 = vld [vmem:[%s7 + $0x58] sm:$0xff]
  %v379 = vld [vmem:[%s7 + $0x60] sm:$0xff]
  %v380 = vld [vmem:[%s7 + $0x68] sm:$0xff]
  %v381 = vld [vmem:[%s7 + $0x70] sm:$0xff]
  %v382 = vld [vmem:[%s7 + $0x78] sm:$0xff]
  %383 = vmatpush.msra.mxu0 %v382
  %384 = vmatpush.msra.mxu0 %v381
  %385 = vmatpush.msra.mxu0 %v380
  %386 = vmatpush.msra.mxu0 %v379
  %387 = vmatpush.msra.mxu0 %v378
  %388 = vmatpush.msra.mxu0 %v377
  %389 = vmatpush.msra.mxu0 %v376
  %390 = vmatpush.msra.mxu0 %v375
  %391 = vmatpush.msra.mxu0 %v374
  %392 = vmatpush.msra.mxu0 %v373
  %393 = vmatpush.msra.mxu0 %v372
  %394 = vmatpush.msra.mxu0 %v371
  %395 = vmatpush.msra.mxu0 %v370
  %396 = vmatpush.msra.mxu0 %v369
  %397 = vmatpush.msra.mxu0 %v368
  %398 = vmatpush.msra.mxu0 %v367
  %399 = vmatmul.f32.gmra.mxu0 %v363
  %v400 = vpop.f32.mrf.mxu0
  %v401 = vadd.f32 0.0, %v400
  %402 = vmatmul.f32.gmra.mxu0 %v364
  %v403 = vpop.f32.mrf.mxu0
  %v404 = vadd.f32 0.0, %v403
  %405 = vmatmul.f32.gmra.mxu0 %v365
  %v406 = vpop.f32.mrf.mxu0
  %v407 = vadd.f32 0.0, %v406
  %408 = vmatmul.f32.gmra.mxu0 %v366
  %v409 = vpop.f32.mrf.mxu0
  %v410 = vadd.f32 0.0, %v409
  %411 = vdwg.mxu0
  %vm412 = vcmask 261120
  %v413 = vsel %vm412, %v401, -inf
  %v414 = vrot.slane %v413, 4
  %v415 = vmax.f32 %v413, %v414
  %v416 = vrot.slane %v415, 2
  %v417 = vmax.f32 %v415, %v416
  %v418 = vrot.slane %v417, 1
  %v419 = vmax.f32 %v417, %v418
  %v420 = vsel %vm412, %v404, -inf
  %v421 = vrot.slane %v420, 4
  %v422 = vmax.f32 %v420, %v421
  %v423 = vrot.slane %v422, 2
  %v424 = vmax.f32 %v422, %v423
  %v425 = vrot.slane %v424, 1
  %v426 = vmax.f32 %v424, %v425
  %v427 = vsel %vm412, %v407, -inf
  %v428 = vrot.slane %v427, 4
  %v429 = vmax.f32 %v427, %v428
  %v430 = vrot.slane %v429, 2
  %v431 = vmax.f32 %v429, %v430
  %v432 = vrot.slane %v431, 1
  %v433 = vmax.f32 %v431, %v432
  %v434 = vsel %vm412, %v410, -inf
  %v435 = vrot.slane %v434, 4
  %v436 = vmax.f32 %v434, %v435
  %v437 = vrot.slane %v436, 2
  %v438 = vmax.f32 %v436, %v437
  %v439 = vrot.slane %v438, 1
  %v440 = vmax.f32 %v438, %v439
  %v441 = vsub.f32 %v401, %v419
  %v442 = vsub.f32 %v404, %v426
  %v443 = vsub.f32 %v407, %v433
  %v444 = vsub.f32 %v410, %v440
  %v445 = vmul.f32 %v441, 1.442695
  %v446 = vpow.pop %v445
  %v447 = vmul.f32 %v442, 1.442695
  %v448 = vpow.pop %v447
  %v449 = vmul.f32 %v443, 1.442695
  %v450 = vpow.pop %v449
  %v451 = vmul.f32 %v444, 1.442695
  %v452 = vpow.pop %v451
  %v453 = vsel %vm412, %v446, 0.0
  %v454 = vrot.slane %v453, 4
  %v455 = vadd.f32 %v453, %v454
  %v456 = vrot.slane %v455, 2
  %v457 = vadd.f32 %v455, %v456
  %v458 = vrot.slane %v457, 1
  %v459 = vadd.f32 %v457, %v458
  %v460 = vsel %vm412, %v448, 0.0
  %v461 = vrot.slane %v460, 4
  %v462 = vadd.f32 %v460, %v461
  %v463 = vrot.slane %v462, 2
  %v464 = vadd.f32 %v462, %v463
  %v465 = vrot.slane %v464, 1
  %v466 = vadd.f32 %v464, %v465
  %v467 = vsel %vm412, %v450, 0.0
  %v468 = vrot.slane %v467, 4
  %v469 = vadd.f32 %v467, %v468
  %v470 = vrot.slane %v469, 2
  %v471 = vadd.f32 %v469, %v470
  %v472 = vrot.slane %v471, 1
  %v473 = vadd.f32 %v471, %v472
  %v474 = vsel %vm412, %v452, 0.0
  %v475 = vrot.slane %v474, 4
  %v476 = vadd.f32 %v474, %v475
  %v477 = vrot.slane %v476, 2
  %v478 = vadd.f32 %v476, %v477
  %v479 = vrot.slane %v478, 1
  %v480 = vadd.f32 %v478, %v479
  %v481 = vrcp.pop %v459
  %v482 = vmul.f32 %v459, %v481
  %v483 = vsub.f32 1.0, %v482
  %v484 = vmul.f32 %v481, %v483
  %v485 = vadd.f32 %v481, %v484
  %vm486 = vweird.f32 %v459
  %vm487 = vweird.f32 %v481
  %vm488 = vmor %vm486, %vm487
  %v489 = vsel %vm488, %v481, %v485
  %v490 = vand.u32 2147483647, %v459
  %vm491 = vcmp.eq.f32.partialorder %v490, 8.507059e+37
  %v492 = vand.u32 %v459, 2147483648
  %v493 = vor.u32 1.1754944e-38, %v492
  %v494 = vsel %vm491, %v493, %v489
  %v495 = vrcp.pop %v466
  %v496 = vmul.f32 %v466, %v495
  %v497 = vsub.f32 1.0, %v496
  %v498 = vmul.f32 %v495, %v497
  %v499 = vadd.f32 %v495, %v498
  %vm500 = vweird.f32 %v466
  %vm501 = vweird.f32 %v495
  %vm502 = vmor %vm500, %vm501
  %v503 = vsel %vm502, %v495, %v499
  %v504 = vand.u32 2147483647, %v466
  %vm505 = vcmp.eq.f32.partialorder %v504, 8.507059e+37
  %v506 = vand.u32 %v466, 2147483648
  %v507 = vor.u32 1.1754944e-38, %v506
  %v508 = vsel %vm505, %v507, %v503
  %v509 = vrcp.pop %v473
  %v510 = vmul.f32 %v473, %v509
  %v511 = vsub.f32 1.0, %v510
  %v512 = vmul.f32 %v509, %v511
  %v513 = vadd.f32 %v509, %v512
  %vm514 = vweird.f32 %v473
  %vm515 = vweird.f32 %v509
  %vm516 = vmor %vm514, %vm515
  %v517 = vsel %vm516, %v509, %v513
  %v518 = vand.u32 2147483647, %v473
  %vm519 = vcmp.eq.f32.partialorder %v518, 8.507059e+37
  %v520 = vand.u32 %v473, 2147483648
  %v521 = vor.u32 1.1754944e-38, %v520
  %v522 = vsel %vm519, %v521, %v517
  %v523 = vrcp.pop %v480
  %v524 = vmul.f32 %v480, %v523
  %v525 = vsub.f32 1.0, %v524
  %v526 = vmul.f32 %v523, %v525
  %v527 = vadd.f32 %v523, %v526
  %vm528 = vweird.f32 %v480
  %vm529 = vweird.f32 %v523
  %vm530 = vmor %vm528, %vm529
  %v531 = vsel %vm530, %v523, %v527
  %v532 = vand.u32 2147483647, %v480
  %vm533 = vcmp.eq.f32.partialorder %v532, 8.507059e+37
  %v534 = vand.u32 %v480, 2147483648
  %v535 = vor.u32 1.1754944e-38, %v534
  %v536 = vsel %vm533, %v535, %v531
  %v537 = vmul.f32 %v446, %v494
  %v538 = vmul.f32 %v448, %v508
  %v539 = vmul.f32 %v450, %v522
  %v540 = vmul.f32 %v452, %v536
  %v541 = vld [vmem:[%s8] sm:$0xff]
  %v542 = vld [vmem:[%s8 + $0x8] sm:$0xff]
  %v543 = vld [vmem:[%s8 + $0x10] sm:$0xff]
  %v544 = vld [vmem:[%s8 + $0x18] sm:$0xff]
  %v546 = vsel %vm412, %v537, 0
  %v549 = vsel %vm412, %v538, 0
  %v552 = vsel %vm412, %v539, 0
  %v555 = vsel %vm412, %v540, 0
  %557 = vmatpush.msra.mxu0 0.0
  %558 = vmatpush.msra.mxu0 0.0
  %559 = vmatpush.msra.mxu0 0.0
  %560 = vmatpush.msra.mxu0 0.0
  %561 = vmatpush.msra.mxu0 0.0
  %562 = vmatpush.msra.mxu0 0.0
  %563 = vmatpush.msra.mxu0 0.0
  %564 = vmatpush.msra.mxu0 0.0
  %565 = vmatpush.msra.mxu0 0.0
  %566 = vmatpush.msra.mxu0 0.0
  %567 = vmatpush.msra.mxu0 0.0
  %568 = vmatpush.msra.mxu0 0.0
  %569 = vmatpush.msra.mxu0 %v544
  %570 = vmatpush.msra.mxu0 %v543
  %571 = vmatpush.msra.mxu0 %v542
  %572 = vmatpush.msra.mxu0 %v541
  %573 = vmatmul.f32.gmra.mxu0 %v546
  %v574 = vpop.f32.mrf.mxu0
  %v575 = vadd.f32 0.0, %v574
  %576 = vmatmul.f32.gmra.mxu0 %v549
  %v577 = vpop.f32.mrf.mxu0
  %v578 = vadd.f32 0.0, %v577
  %579 = vmatmul.f32.gmra.mxu0 %v552
  %v580 = vpop.f32.mrf.mxu0
  %v581 = vadd.f32 0.0, %v580
  %582 = vmatmul.f32.gmra.mxu0 %v555
  %v583 = vpop.f32.mrf.mxu0
  %v584 = vadd.f32 0.0, %v583
  %585 = vdwg.mxu0
  %v586 = vmul.f32 %v575, %v340
  %v587 = vmul.f32 %v578, %v343
  %v588 = vmul.f32 %v581, %v346
  %v589 = vmul.f32 %v584, %v349
  %v590 = vrot.slane %v586, 4
  %v591 = vadd.f32 %v586, %v590
  %v592 = vrot.slane %v591, 2
  %v593 = vadd.f32 %v591, %v592
  %v594 = vrot.slane %v593, 1
  %v595 = vadd.f32 %v593, %v594
  %v596 = vrot.slane %v587, 4
  %v597 = vadd.f32 %v587, %v596
  %v598 = vrot.slane %v597, 2
  %v599 = vadd.f32 %v597, %v598
  %v600 = vrot.slane %v599, 1
  %v601 = vadd.f32 %v599, %v600
  %v602 = vrot.slane %v588, 4
  %v603 = vadd.f32 %v588, %v602
  %v604 = vrot.slane %v603, 2
  %v605 = vadd.f32 %v603, %v604
  %v606 = vrot.slane %v605, 1
  %v607 = vadd.f32 %v605, %v606
  %v608 = vrot.slane %v589, 4
  %v609 = vadd.f32 %v589, %v608
  %v610 = vrot.slane %v609, 2
  %v611 = vadd.f32 %v609, %v610
  %v612 = vrot.slane %v611, 1
  %v613 = vadd.f32 %v611, %v612
  %v614 = vld [vmem:[%s5] sm:$0xff]
  %v615 = vld [vmem:[%s5 + $0x8] sm:$0xff]
  %v616 = vld [vmem:[%s5 + $0x10] sm:$0xff]
  %v617 = vld [vmem:[%s5 + $0x18] sm:$0xff]
  %v618 = vld [vmem:[%s5 + $0x20] sm:$0xff]
  %v619 = vld [vmem:[%s5 + $0x28] sm:$0xff]
  %v620 = vld [vmem:[%s5 + $0x30] sm:$0xff]
  %v621 = vld [vmem:[%s5 + $0x38] sm:$0xff]
  %v622 = vld [vmem:[%s5 + $0x40] sm:$0xff]
  %v623 = vld [vmem:[%s5 + $0x48] sm:$0xff]
  %v624 = vld [vmem:[%s5 + $0x50] sm:$0xff]
  %v625 = vld [vmem:[%s5 + $0x58] sm:$0xff]
  %v626 = vld [vmem:[%s5 + $0x60] sm:$0xff]
  %v627 = vld [vmem:[%s5 + $0x68] sm:$0xff]
  %v628 = vld [vmem:[%s5 + $0x70] sm:$0xff]
  %v629 = vld [vmem:[%s5 + $0x78] sm:$0xff]
  %v630 = vld [vmem:[%s6] sm:$0x1]
  %v632 = vperm.slane %v630, 0
  %vm638 = vcmask 1041409
  %v639 = vsel %vm638, %v601, %v595
  %vm640 = vcmask 1042434
  %v641 = vsel %vm640, %v607, %v639
  %vm642 = vcmask 1043459
  %v643 = vsel %vm642, %v613, %v641
  %645 = vmatpush.msra.mxu0 %v629
  %646 = vmatpush.msra.mxu0 %v628
  %647 = vmatpush.msra.mxu0 %v627
  %648 = vmatpush.msra.mxu0 %v626
  %649 = vmatpush.msra.mxu0 %v625
  %650 = vmatpush.msra.mxu0 %v624
  %651 = vmatpush.msra.mxu0 %v623
  %652 = vmatpush.msra.mxu0 %v622
  %653 = vmatpush.msra.mxu0 %v621
  %654 = vmatpush.msra.mxu0 %v620
  %655 = vmatpush.msra.mxu0 %v619
  %656 = vmatpush.msra.mxu0 %v618
  %657 = vmatpush.msra.mxu0 %v617
  %658 = vmatpush.msra.mxu0 %v616
  %659 = vmatpush.msra.mxu0 %v615
  %660 = vmatpush.msra.mxu0 %v614
  %661 = vmatmul.f32.gmra.mxu0 %v643
  %v662 = vpop.f32.mrf.mxu0
  %v663 = vadd.f32 %v632, %v662
  %664 = vdwg.mxu0
  %v665 = vadd.f32 %v663, %v32
  %666 = vst [vmem:[%s9] sm:$0xf] %v665
  // Predicated region
  $region38: #{cross_attention_csvit.1} parent=0 // pred_check
    _
  $region39: #{cross_attention_csvit.1} parent=0 // pred_check_branch
    %668 = sbr.rel (0) target = $region41
  $region40: #{cross_attention_csvit.1} parent=0 // pred_region
    _
  $region41: #{cross_attention_csvit.1} parent=0 // pred_fallthru
    _
  // Predicated region
  $region42: #{cross_attention_csvit.1} parent=0 // pred_check
    _
  $region43: #{cross_attention_csvit.1} parent=0 // pred_check_branch
    %670 = sbr.rel (0) target = $region45
  $region44: #{cross_attention_csvit.1} parent=0 // pred_region
    _
  $region45: #{cross_attention_csvit.1} parent=0 // pred_fallthru
    _

</llo_original>
